<compile_context>
chip_gen: v7x
topology: tpu7x:2x2x1
jax: 0.10.0
libtpu: 0.0.40
codegen_flags: <defaults>
</compile_context>

<pallas_src>
import functools

import jax
import jax.numpy as jnp
from jax.experimental import pallas as pl
from jax.experimental.pallas import tpu as pltpu


def fused_mbconv_kernel(x_ref, m_ref, w1_ref, b1_ref, w2_ref, b2_ref, o_ref,
                        *, H, W):
    """One batch element per grid step.  Spatial (H*W) is the lane axis.

    x_ref : (1, Cin, H*W)   f32  NCHW input, spatial flattened (no padding)
    m_ref : (9, H*W)        f32  in-bounds masks for the 9 conv taps
    w1_ref: (Cexp, 9*Cin)   bf16 3x3 expand conv weights, BN1 scale folded
    b1_ref: (Cexp, 1)       f32  folded BN1 bias
    w2_ref: (Cout, Cexp)    bf16 1x1 project conv weights, BN2 scale folded
    b2_ref: (Cout, 1)       f32  folded BN2 bias
    o_ref : (1, Cout, H*W)  f32  output (NCHW, spatial flattened)
    """
    HW = H * W
    Cout = o_ref.shape[1]

    x = x_ref[0]                                     # (Cin, HW) f32

    # im2col: 9 lane-rolled + halo-masked views of x, stacked along sublanes.
    taps = []
    k = 0
    for dy in (-1, 0, 1):
        for dx in (-1, 0, 1):
            off = dy * W + dx                        # static shift in flat H*W
            if off != 0:
                shifted = pltpu.roll(x, shift=(-off) % HW, axis=1)
            else:
                shifted = x
            taps.append(shifted * m_ref[k:k + 1, :])  # zero the out-of-bounds halo
            k += 1
    patch = jnp.concatenate(taps, axis=0).astype(jnp.bfloat16)   # (9*Cin, HW)

    # expand_conv: 3x3 conv as a single K=9*Cin GEMM + folded BN + SiLU (f32).
    h = jnp.dot(w1_ref[...], patch, preferred_element_type=jnp.float32)
    h = h + b1_ref[...]
    h = h * jax.nn.sigmoid(h)

    # project_conv: 1x1 conv + folded BN (Identity activation).
    p = jnp.dot(w2_ref[...], h.astype(jnp.bfloat16),
                preferred_element_type=jnp.float32)
    p = p + b2_ref[...]

    # TODO(synk): stochastic_depth is identity in eval mode; training-mode
    # batch-wise row drop is not implemented.
    o_ref[...] = (p + x).reshape(1, Cout, HW).astype(o_ref.dtype)


def fold_bn(gamma, beta, mean, var, eps=1e-5):
    scale = gamma / jnp.sqrt(var + eps)
    bias = beta - mean * scale
    return scale, bias


def fused_mbconv_forward(x_nchw, w1, bn1, w2, bn2):
    """x_nchw: (N, Cin, H, W).  w1: (3,3,Cin,Cexp) HWIO.  w2: (Cexp, Cout)."""
    N, Cin, H, W = x_nchw.shape
    KH, KW, _, Cexp = w1.shape
    Cout = w2.shape[1]
    HW = H * W

    # Only the expand_ratio != 1, stride == 1, use_res_connect branch of
    # FusedMBConv is implemented; fail loudly otherwise.
    assert (KH, KW) == (3, 3), "expand_conv must be a 3x3 stride-1 conv"
    assert Cin == Cout, "residual branch requires in_planes == out_planes"

    s1, b1 = fold_bn(*bn1)
    s2, b2 = fold_bn(*bn2)

    # Fold BN scales into the conv weights and transpose so channels are rows
    # (sublanes) and the flattened spatial H*W is the lane axis.
    w1_t = (w1.astype(jnp.float32).reshape(9 * Cin, Cexp).T
            * s1[:, None]).astype(jnp.bfloat16)            # (Cexp, 9*Cin)
    w2_t = (w2.astype(jnp.float32).T * s2[:, None]).astype(jnp.bfloat16)  # (Cout, Cexp)
    b1c = b1.reshape(Cexp, 1).astype(jnp.float32)
    b2c = b2.reshape(Cout, 1).astype(jnp.float32)

    # Static in-bounds masks for the 9 taps of the 3x3 conv (pad=1).
    rows = jnp.arange(H, dtype=jnp.int32).reshape(H, 1)
    cols = jnp.arange(W, dtype=jnp.int32).reshape(1, W)
    masks = []
    for dy in (-1, 0, 1):
        for dx in (-1, 0, 1):
            m = ((rows + dy >= 0) & (rows + dy < H) &
                 (cols + dx >= 0) & (cols + dx < W))
            masks.append(m.reshape(HW))
    masks = jnp.stack(masks, axis=0).astype(jnp.float32)    # (9, HW)

    # NCHW consumed directly; merging the trailing H,W dims is a free reshape.
    x_flat = x_nchw.reshape(N, Cin, HW).astype(jnp.float32)

    out = pl.pallas_call(
        functools.partial(fused_mbconv_kernel, H=H, W=W),
        out_shape=jax.ShapeDtypeStruct((N, Cout, HW), jnp.float32),
        grid_spec=pltpu.PrefetchScalarGridSpec(
            num_scalar_prefetch=0,
            grid=(N,),
            in_specs=[
                pl.BlockSpec((1, Cin, HW), lambda n: (n, 0, 0)),
                pl.BlockSpec((9, HW), lambda n: (0, 0)),
                pl.BlockSpec((Cexp, 9 * Cin), lambda n: (0, 0)),
                pl.BlockSpec((Cexp, 1), lambda n: (0, 0)),
                pl.BlockSpec((Cout, Cexp), lambda n: (0, 0)),
                pl.BlockSpec((Cout, 1), lambda n: (0, 0)),
            ],
            out_specs=pl.BlockSpec((1, Cout, HW), lambda n: (n, 0, 0)),
        ),
        compiler_params=pltpu.CompilerParams(
            dimension_semantics=("parallel",)),
    )(x_flat, masks, w1_t, b1c, w2_t, b2c)

    return out.reshape(N, Cout, H, W)   # already NCHW — no transpose needed


def reference_forward(x_nchw, w1, bn1, w2, bn2):
    """Pure-JAX reference of the same forward pass (NCHW in / NCHW out)."""
    x = jnp.transpose(x_nchw, (0, 2, 3, 1)).astype(jnp.float32)
    y = jax.lax.conv_general_dilated(
        x, w1.astype(jnp.float32), window_strides=(1, 1), padding="SAME",
        dimension_numbers=("NHWC", "HWIO", "NHWC"),
        precision=jax.lax.Precision.HIGHEST)
    s1, b1 = fold_bn(*bn1)
    y = y * s1 + b1
    y = y * jax.nn.sigmoid(y)
    z = jnp.einsum("nhwc,cd->nhwd", y, w2.astype(jnp.float32),
                   precision=jax.lax.Precision.HIGHEST)
    s2, b2 = fold_bn(*bn2)
    z = z * s2 + b2
    z = z + x
    return jnp.transpose(z, (0, 3, 1, 2))


if __name__ == "__main__":
    # Module config: in_planes = out_planes = 4, expand_ratio = 4, stride = 1.
    N, Cin, H, W = 2, 4, 16, 16
    expand_ratio = 4
    Cexp = Cin * expand_ratio
    Cout = Cin

    key = jax.random.PRNGKey(0)
    k = jax.random.split(key, 12)

    x = jax.random.normal(k[0], (N, Cin, H, W), jnp.float32)

    # expand_conv: 3x3 conv (HWIO) + BN params (eval-mode running stats).
    w1 = 0.1 * jax.random.normal(k[1], (3, 3, Cin, Cexp), jnp.float32)
    bn1 = (0.5 + jax.random.uniform(k[2], (Cexp,)),            # gamma
           0.1 * jax.random.normal(k[3], (Cexp,)),             # beta
           0.1 * jax.random.normal(k[4], (Cexp,)),             # running_mean
           0.5 + jax.random.uniform(k[5], (Cexp,)))            # running_var

    # project_conv: 1x1 conv + BN params.
    w2 = 0.1 * jax.random.normal(k[6], (Cexp, Cout), jnp.float32)
    bn2 = (0.5 + jax.random.uniform(k[7], (Cout,)),
           0.1 * jax.random.normal(k[8], (Cout,)),
           0.1 * jax.random.normal(k[9], (Cout,)),
           0.5 + jax.random.uniform(k[10], (Cout,)))

    out = fused_mbconv_forward(x, w1, bn1, w2, bn2)
    out = jax.block_until_ready(out)

    ref = reference_forward(x, w1, bn1, w2, bn2)
    ref = jax.block_until_ready(ref)

    assert out.shape == (N, Cout, H, W), out.shape
    assert jnp.allclose(out, ref, rtol=2e-2, atol=2e-2), \
        float(jnp.max(jnp.abs(out - ref)))

    print("KERNEL_OK")
</pallas_src>

<mosaic_0001>
module attributes {stable_mosaic.version = 11 : i64} {
  func.func @fused_mbconv_kernel(%arg0: i32, %arg1: memref<1x4x256xf32, #tpu.memory_space<vmem>>, %arg2: memref<9x256xf32, #tpu.memory_space<vmem>>, %arg3: memref<16x36xbf16, #tpu.memory_space<vmem>>, %arg4: memref<16x1xf32, #tpu.memory_space<vmem>>, %arg5: memref<4x16xbf16, #tpu.memory_space<vmem>>, %arg6: memref<4x1xf32, #tpu.memory_space<vmem>>, %arg7: memref<1x4x256xf32, #tpu.memory_space<vmem>>) attributes {dimension_semantics = [#tpu.dimension_semantics<parallel>], iteration_bounds = array<i64: 2>, scalar_prefetch = 0 : i64, scratch_operands = 0 : i64, tpu.core_type = #tpu.core_type<tc>, window_params = [{transform_indices = @transform_0, window_bounds = array<i64: 1, 4, 256>}, {pipeline_mode = #tpu.pipeline_mode<synchronous>, transform_indices = @transform_1, window_bounds = array<i64: 9, 256>}, {pipeline_mode = #tpu.pipeline_mode<synchronous>, transform_indices = @transform_2, window_bounds = array<i64: 16, 36>}, {pipeline_mode = #tpu.pipeline_mode<synchronous>, transform_indices = @transform_3, window_bounds = array<i64: 16, 1>}, {pipeline_mode = #tpu.pipeline_mode<synchronous>, transform_indices = @transform_4, window_bounds = array<i64: 4, 16>}, {pipeline_mode = #tpu.pipeline_mode<synchronous>, transform_indices = @transform_5, window_bounds = array<i64: 4, 1>}, {transform_indices = @transform_6, window_bounds = array<i64: 1, 4, 256>}]} {
    %c0 = arith.constant 0 : index
    %c0_0 = arith.constant 0 : index
    %c0_1 = arith.constant 0 : index
    %0 = vector.load %arg1[%c0, %c0_0, %c0_1] : memref<1x4x256xf32, #tpu.memory_space<vmem>>, vector<1x4x256xf32>
    %1 = vector.shape_cast %0 : vector<1x4x256xf32> to vector<4x256xf32>
    %c17_i32 = arith.constant 17 : i32
    %2 = tpu.dynamic_rotate %1 by %c17_i32 dim 1 : vector<4x256xf32>, i32 -> vector<4x256xf32>
    %c0_2 = arith.constant 0 : index
    %c0_3 = arith.constant 0 : index
    %3 = vector.load %arg2[%c0_2, %c0_3] : memref<9x256xf32, #tpu.memory_space<vmem>>, vector<1x256xf32>
    %4 = vector.broadcast %3 : vector<1x256xf32> to vector<4x256xf32>
    %5 = arith.mulf %2, %4 : vector<4x256xf32>
    %c16_i32 = arith.constant 16 : i32
    %6 = tpu.dynamic_rotate %1 by %c16_i32 dim 1 : vector<4x256xf32>, i32 -> vector<4x256xf32>
    %c1 = arith.constant 1 : index
    %c0_4 = arith.constant 0 : index
    %7 = vector.load %arg2[%c1, %c0_4] : memref<9x256xf32, #tpu.memory_space<vmem>>, vector<1x256xf32>
    %8 = vector.broadcast %7 : vector<1x256xf32> to vector<4x256xf32>
    %9 = arith.mulf %6, %8 : vector<4x256xf32>
    %c15_i32 = arith.constant 15 : i32
    %10 = tpu.dynamic_rotate %1 by %c15_i32 dim 1 : vector<4x256xf32>, i32 -> vector<4x256xf32>
    %c2 = arith.constant 2 : index
    %c0_5 = arith.constant 0 : index
    %11 = vector.load %arg2[%c2, %c0_5] : memref<9x256xf32, #tpu.memory_space<vmem>>, vector<1x256xf32>
    %12 = vector.broadcast %11 : vector<1x256xf32> to vector<4x256xf32>
    %13 = arith.mulf %10, %12 : vector<4x256xf32>
    %c1_i32 = arith.constant 1 : i32
    %14 = tpu.dynamic_rotate %1 by %c1_i32 dim 1 : vector<4x256xf32>, i32 -> vector<4x256xf32>
    %c3 = arith.constant 3 : index
    %c0_6 = arith.constant 0 : index
    %15 = vector.load %arg2[%c3, %c0_6] : memref<9x256xf32, #tpu.memory_space<vmem>>, vector<1x256xf32>
    %16 = vector.broadcast %15 : vector<1x256xf32> to vector<4x256xf32>
    %17 = arith.mulf %14, %16 : vector<4x256xf32>
    %c4 = arith.constant 4 : index
    %c0_7 = arith.constant 0 : index
    %18 = vector.load %arg2[%c4, %c0_7] : memref<9x256xf32, #tpu.memory_space<vmem>>, vector<1x256xf32>
    %19 = vector.broadcast %18 : vector<1x256xf32> to vector<4x256xf32>
    %20 = arith.mulf %1, %19 : vector<4x256xf32>
    %c255_i32 = arith.constant 255 : i32
    %21 = tpu.dynamic_rotate %1 by %c255_i32 dim 1 : vector<4x256xf32>, i32 -> vector<4x256xf32>
    %c5 = arith.constant 5 : index
    %c0_8 = arith.constant 0 : index
    %22 = vector.load %arg2[%c5, %c0_8] : memref<9x256xf32, #tpu.memory_space<vmem>>, vector<1x256xf32>
    %23 = vector.broadcast %22 : vector<1x256xf32> to vector<4x256xf32>
    %24 = arith.mulf %21, %23 : vector<4x256xf32>
    %c241_i32 = arith.constant 241 : i32
    %25 = tpu.dynamic_rotate %1 by %c241_i32 dim 1 : vector<4x256xf32>, i32 -> vector<4x256xf32>
    %c6 = arith.constant 6 : index
    %c0_9 = arith.constant 0 : index
    %26 = vector.load %arg2[%c6, %c0_9] : memref<9x256xf32, #tpu.memory_space<vmem>>, vector<1x256xf32>
    %27 = vector.broadcast %26 : vector<1x256xf32> to vector<4x256xf32>
    %28 = arith.mulf %25, %27 : vector<4x256xf32>
    %c240_i32 = arith.constant 240 : i32
    %29 = tpu.dynamic_rotate %1 by %c240_i32 dim 1 : vector<4x256xf32>, i32 -> vector<4x256xf32>
    %c7 = arith.constant 7 : index
    %c0_10 = arith.constant 0 : index
    %30 = vector.load %arg2[%c7, %c0_10] : memref<9x256xf32, #tpu.memory_space<vmem>>, vector<1x256xf32>
    %31 = vector.broadcast %30 : vector<1x256xf32> to vector<4x256xf32>
    %32 = arith.mulf %29, %31 : vector<4x256xf32>
    %c239_i32 = arith.constant 239 : i32
    %33 = tpu.dynamic_rotate %1 by %c239_i32 dim 1 : vector<4x256xf32>, i32 -> vector<4x256xf32>
    %c8 = arith.constant 8 : index
    %c0_11 = arith.constant 0 : index
    %34 = vector.load %arg2[%c8, %c0_11] : memref<9x256xf32, #tpu.memory_space<vmem>>, vector<1x256xf32>
    %35 = vector.broadcast %34 : vector<1x256xf32> to vector<4x256xf32>
    %36 = arith.mulf %33, %35 : vector<4x256xf32>
    %37 = tpu.concatenate %5, %9, %13, %17, %20, %24, %28, %32, %36 in 0 : vector<4x256xf32>, vector<4x256xf32>, vector<4x256xf32>, vector<4x256xf32>, vector<4x256xf32>, vector<4x256xf32>, vector<4x256xf32>, vector<4x256xf32>, vector<4x256xf32> -> vector<36x256xf32>
    %38 = arith.truncf %37 : vector<36x256xf32> to vector<36x256xbf16>
    %c0_12 = arith.constant 0 : index
    %c0_13 = arith.constant 0 : index
    %39 = vector.load %arg3[%c0_12, %c0_13] : memref<16x36xbf16, #tpu.memory_space<vmem>>, vector<16x36xbf16>
    %cst = arith.constant dense<0.000000e+00> : vector<16x256xf32>
    %40 = tpu.matmul %39, %38, %cst {dimension_numbers = #tpu.dot_dimension_numbers<[1], [0], [0], [1], [0, 0, 1, 1], [], []>} : vector<16x36xbf16>, vector<36x256xbf16>, vector<16x256xf32> -> vector<16x256xf32>
    %c0_14 = arith.constant 0 : index
    %c0_15 = arith.constant 0 : index
    %41 = vector.load %arg4[%c0_14, %c0_15] : memref<16x1xf32, #tpu.memory_space<vmem>>, vector<16x1xf32>
    %42 = vector.broadcast %41 : vector<16x1xf32> to vector<16x256xf32>
    %43 = arith.addf %40, %42 : vector<16x256xf32>
    %44 = arith.negf %43 : vector<16x256xf32>
    %45 = math.exp %44 : vector<16x256xf32>
    %cst_16 = arith.constant 1.000000e+00 : f32
    %46 = vector.broadcast %cst_16 : f32 to vector<16x256xf32>
    %47 = arith.addf %46, %45 : vector<16x256xf32>
    %48 = arith.divf %46, %47 : vector<16x256xf32>
    %49 = arith.mulf %43, %48 : vector<16x256xf32>
    %c0_17 = arith.constant 0 : index
    %c0_18 = arith.constant 0 : index
    %50 = vector.load %arg5[%c0_17, %c0_18] : memref<4x16xbf16, #tpu.memory_space<vmem>>, vector<4x16xbf16>
    %51 = arith.truncf %49 : vector<16x256xf32> to vector<16x256xbf16>
    %cst_19 = arith.constant dense<0.000000e+00> : vector<4x256xf32>
    %52 = tpu.matmul %50, %51, %cst_19 {dimension_numbers = #tpu.dot_dimension_numbers<[1], [0], [0], [1], [0, 0, 1, 1], [], []>} : vector<4x16xbf16>, vector<16x256xbf16>, vector<4x256xf32> -> vector<4x256xf32>
    %c0_20 = arith.constant 0 : index
    %c0_21 = arith.constant 0 : index
    %53 = vector.load %arg6[%c0_20, %c0_21] : memref<4x1xf32, #tpu.memory_space<vmem>>, vector<4x1xf32>
    %54 = vector.broadcast %53 : vector<4x1xf32> to vector<4x256xf32>
    %55 = arith.addf %52, %54 : vector<4x256xf32>
    %56 = arith.addf %55, %1 : vector<4x256xf32>
    %57 = vector.shape_cast %56 : vector<4x256xf32> to vector<1x4x256xf32>
    %c0_22 = arith.constant 0 : index
    %c0_23 = arith.constant 0 : index
    %c0_24 = arith.constant 0 : index
    %58 = vector.load %arg7[%c0_22, %c0_23, %c0_24] : memref<1x4x256xf32, #tpu.memory_space<vmem>>, vector<1x4x256xf32>
    tpu.vector_store %arg7[%c0_22, %c0_23, %c0_24], %57 {strides = array<i32>} : memref<1x4x256xf32, #tpu.memory_space<vmem>>, vector<1x4x256xf32>,
    return
  }
  func.func @transform_0(%arg0: i32) -> (i32, i32, i32) {
    %c0_i32 = arith.constant 0 : i32
    %c0_i32_0 = arith.constant 0 : i32
    %c0_i32_1 = arith.constant 0 : i32
    return %arg0, %c0_i32, %c0_i32_0 : i32, i32, i32
  }
  func.func @transform_1(%arg0: i32) -> (i32, i32) {
    %c0_i32 = arith.constant 0 : i32
    %c0_i32_0 = arith.constant 0 : i32
    %c0_i32_1 = arith.constant 0 : i32
    return %c0_i32, %c0_i32_0 : i32, i32
  }
  func.func @transform_2(%arg0: i32) -> (i32, i32) {
    %c0_i32 = arith.constant 0 : i32
    %c0_i32_0 = arith.constant 0 : i32
    %c0_i32_1 = arith.constant 0 : i32
    return %c0_i32, %c0_i32_0 : i32, i32
  }
  func.func @transform_3(%arg0: i32) -> (i32, i32) {
    %c0_i32 = arith.constant 0 : i32
    %c0_i32_0 = arith.constant 0 : i32
    %c0_i32_1 = arith.constant 0 : i32
    return %c0_i32, %c0_i32_0 : i32, i32
  }
  func.func @transform_4(%arg0: i32) -> (i32, i32) {
    %c0_i32 = arith.constant 0 : i32
    %c0_i32_0 = arith.constant 0 : i32
    %c0_i32_1 = arith.constant 0 : i32
    return %c0_i32, %c0_i32_0 : i32, i32
  }
  func.func @transform_5(%arg0: i32) -> (i32, i32) {
    %c0_i32 = arith.constant 0 : i32
    %c0_i32_0 = arith.constant 0 : i32
    %c0_i32_1 = arith.constant 0 : i32
    return %c0_i32, %c0_i32_0 : i32, i32
  }
  func.func @transform_6(%arg0: i32) -> (i32, i32, i32) {
    %c0_i32 = arith.constant 0 : i32
    %c0_i32_0 = arith.constant 0 : i32
    %c0_i32_1 = arith.constant 0 : i32
    return %arg0, %c0_i32, %c0_i32_0 : i32, i32, i32
  }
}

</mosaic_0001>

<llo_original>
// kernel: tpu_custom_call.1
$region0: #{tpu_custom_call.1}
  #allocation0 [shape = 'u32[]', space=smem, size = 0x4, offset = 0x4, fixed_abs, tag = 'smem constant byte address 0x4 - core index']
  #allocation1 [shape = 'u32[144,128]{1,0:T(1,128)}', space=vmem, size = 0x12000, scoped, tag = 'internal scratch']
  %s0 = inlined_call_operand.vmem [shape: f32[2,4,256], index: 0, kind: input, shape index: {}]
  %s1 = inlined_call_operand.hbm [shape: f32[9,256], index: 1, kind: input, shape index: {}]
  %s2 = inlined_call_operand.vmem [shape: bf16[16,36], index: 2, kind: input, shape index: {}]
  %s3 = inlined_call_operand.vmem [shape: f32[16,1], index: 3, kind: input, shape index: {}]
  %s4 = inlined_call_operand.vmem [shape: bf16[4,16], index: 4, kind: input, shape index: {}]
  %s5 = inlined_call_operand.vmem [shape: f32[4,1], index: 5, kind: input, shape index: {}]
  %s6 = inlined_call_operand.hbm [shape: f32[2,4,256], index: 6, kind: output, shape index: {}]
  %s7 = sld [smem:[#allocation0]]
  $region61: #{tpu_custom_call.1} parent=0
    _
  %s9 = ssub.s32 1, %s7
  %s10 = scalar_select 0, %s9, %s7
  $region1: #{tpu_custom_call.1} parent=0
    #allocation2 [shape = 'u8[16384]{0}', space=vmem, size = 0x4000, scoped, tag = 'input window, operand 1, single buffered']
    #allocation3 [shape = 's32[2]{0}', space=sflag, size = 0x8, scoped, tag = 'scoped memory for tpu_custom_call.1']
    #allocation4 [shape = 's32[2]{0}', space=sflag, size = 0x8, scoped, tag = 'scoped memory for tpu_custom_call.1']
    #allocation5 [shape = 'u8[8192]{0}', space=vmem, size = 0x2000, scoped, tag = 'output window, operand 0']
    %11 = vsyncpa [#allocation3], 0
    %12 = vsyncpa [#allocation4], 0
    %s13 = scalar_lea.sflag [#allocation4], 1
    %14 = vsyncpa %s13, 0
    loop: start=0, step=1, limit=4
    $region2: #{tpu_custom_call.1} parent=1 // loop_pre_header
      _
    $region3: #{tpu_custom_call.1} parent=1 // loop_header
      %s16 = sphi 0, %s20
      %p17 = scmp.ge.s32.totalorder %s16, 4
      %s26 = sphi 0, %s28
      %s29 = sphi 0, %s26
      %s30 = sphi 0, %s29
      %s46 = sphi 0, %s30
      %s50 = sphi 0, %s50
      %s52 = sphi 0, %s50
      %s53 = sphi 0, %s52
      %s67 = sphi 0, %s53
      %s71 = sphi 0, %s71
      %s73 = sphi 0, %s71
      %s74 = sphi 0, %s73
      %s88 = sphi 0, %s74
      %s92 = sphi 0, %s92
      %s94 = sphi 0, %s92
      %s95 = sphi 0, %s94
      %s109 = sphi 0, %s95
      %s113 = sphi 0, %s113
      %s115 = sphi 0, %s113
      %s116 = sphi 0, %s115
      %s130 = sphi 0, %s116
      %s134 = sphi 0, %s134
      %s136 = sphi 0, %s134
      %s137 = sphi 0, %s136
      %s151 = sphi 0, %s137
      %s157 = sphi 0, %s159
      %s160 = sphi 0, %s157
      %s161 = sphi 0, %s160
      %s177 = sphi 0, %s161
    $region4: #{tpu_custom_call.1} parent=1 // loop_header_branch
      %19 = sbr.rel (%p17) target = $region8
    $region5: #{tpu_custom_call.1} parent=1 // loop_body
      %s21 = ssub.s32 %s16, 1
      %s22 = ssub.s32 %s16, 2
      %s23 = sadd.s32 %s16, 1
      %s24 = ssub.s32 %s16, %s23
      %p25 = scmp.eq.s32.totalorder %s24, 0
      %s27 = sadd.s32 %s26, 1
      %s28 = scalar_select %p25, %s26, %s27
      %p31 = pneg %p25
      %p32 = scmp.eq.s32.totalorder %s16, 1
      %p33 = por %p31, %p32
      %p34 = scmp.ne.s32.totalorder %s26, %s29
      %p35 = scmp.eq.s32.totalorder %s16, 0
      %p36 = por %p34, %p35
      %p37 = scmp.ne.s32.totalorder %s26, %s29
      %p38 = scmp.eq.s32.totalorder %s21, 1
      %p39 = por %p37, %p38
      %p40 = scmp.ne.s32.totalorder %s29, %s30
      %p41 = scmp.eq.s32.totalorder %s21, 0
      %p42 = por %p40, %p41
      %p43 = scmp.ne.s32.totalorder %s29, %s30
      %p44 = scmp.eq.s32.totalorder %s22, 1
      %p45 = por %p43, %p44
      %p47 = scmp.ne.s32.totalorder %s30, %s46
      %p48 = scmp.eq.s32.totalorder %s22, 0
      %p49 = por %p47, %p48
      %s51 = sadd.s32 %s50, 1
      %p54 = scmp.eq.s32.totalorder %s16, 1
      %p55 = scmp.ne.s32.totalorder %s50, %s52
      %p56 = scmp.eq.s32.totalorder %s16, 0
      %p57 = por %p55, %p56
      %p58 = scmp.ne.s32.totalorder %s50, %s52
      %p59 = scmp.eq.s32.totalorder %s21, 1
      %p60 = por %p58, %p59
      %p61 = scmp.ne.s32.totalorder %s52, %s53
      %p62 = scmp.eq.s32.totalorder %s21, 0
      %p63 = por %p61, %p62
      %p64 = scmp.ne.s32.totalorder %s52, %s53
      %p65 = scmp.eq.s32.totalorder %s22, 1
      %p66 = por %p64, %p65
      %p68 = scmp.ne.s32.totalorder %s53, %s67
      %p69 = scmp.eq.s32.totalorder %s22, 0
      %p70 = por %p68, %p69
      %s72 = sadd.s32 %s71, 1
      %p75 = scmp.eq.s32.totalorder %s16, 1
      %p76 = scmp.ne.s32.totalorder %s71, %s73
      %p77 = scmp.eq.s32.totalorder %s16, 0
      %p78 = por %p76, %p77
      %p79 = scmp.ne.s32.totalorder %s71, %s73
      %p80 = scmp.eq.s32.totalorder %s21, 1
      %p81 = por %p79, %p80
      %p82 = scmp.ne.s32.totalorder %s73, %s74
      %p83 = scmp.eq.s32.totalorder %s21, 0
      %p84 = por %p82, %p83
      %p85 = scmp.ne.s32.totalorder %s73, %s74
      %p86 = scmp.eq.s32.totalorder %s22, 1
      %p87 = por %p85, %p86
      %p89 = scmp.ne.s32.totalorder %s74, %s88
      %p90 = scmp.eq.s32.totalorder %s22, 0
      %p91 = por %p89, %p90
      %s93 = sadd.s32 %s92, 1
      %p96 = scmp.eq.s32.totalorder %s16, 1
      %p97 = scmp.ne.s32.totalorder %s92, %s94
      %p98 = scmp.eq.s32.totalorder %s16, 0
      %p99 = por %p97, %p98
      %p100 = scmp.ne.s32.totalorder %s92, %s94
      %p101 = scmp.eq.s32.totalorder %s21, 1
      %p102 = por %p100, %p101
      %p103 = scmp.ne.s32.totalorder %s94, %s95
      %p104 = scmp.eq.s32.totalorder %s21, 0
      %p105 = por %p103, %p104
      %p106 = scmp.ne.s32.totalorder %s94, %s95
      %p107 = scmp.eq.s32.totalorder %s22, 1
      %p108 = por %p106, %p107
      %p110 = scmp.ne.s32.totalorder %s95, %s109
      %p111 = scmp.eq.s32.totalorder %s22, 0
      %p112 = por %p110, %p111
      %s114 = sadd.s32 %s113, 1
      %p117 = scmp.eq.s32.totalorder %s16, 1
      %p118 = scmp.ne.s32.totalorder %s113, %s115
      %p119 = scmp.eq.s32.totalorder %s16, 0
      %p120 = por %p118, %p119
      %p121 = scmp.ne.s32.totalorder %s113, %s115
      %p122 = scmp.eq.s32.totalorder %s21, 1
      %p123 = por %p121, %p122
      %p124 = scmp.ne.s32.totalorder %s115, %s116
      %p125 = scmp.eq.s32.totalorder %s21, 0
      %p126 = por %p124, %p125
      %p127 = scmp.ne.s32.totalorder %s115, %s116
      %p128 = scmp.eq.s32.totalorder %s22, 1
      %p129 = por %p127, %p128
      %p131 = scmp.ne.s32.totalorder %s116, %s130
      %p132 = scmp.eq.s32.totalorder %s22, 0
      %p133 = por %p131, %p132
      %s135 = sadd.s32 %s134, 1
      %p138 = scmp.eq.s32.totalorder %s16, 1
      %p139 = scmp.ne.s32.totalorder %s134, %s136
      %p140 = scmp.eq.s32.totalorder %s16, 0
      %p141 = por %p139, %p140
      %p142 = scmp.ne.s32.totalorder %s134, %s136
      %p143 = scmp.eq.s32.totalorder %s21, 1
      %p144 = por %p142, %p143
      %p145 = scmp.ne.s32.totalorder %s136, %s137
      %p146 = scmp.eq.s32.totalorder %s21, 0
      %p147 = por %p145, %p146
      %p148 = scmp.ne.s32.totalorder %s136, %s137
      %p149 = scmp.eq.s32.totalorder %s22, 1
      %p150 = por %p148, %p149
      %p152 = scmp.ne.s32.totalorder %s137, %s151
      %p153 = scmp.eq.s32.totalorder %s22, 0
      %p154 = por %p152, %p153
      %s155 = ssub.s32 %s16, %s23
      %p156 = scmp.eq.s32.totalorder %s155, 0
      %s158 = sadd.s32 %s157, 1
      %s159 = scalar_select %p156, %s157, %s158
      %p162 = pneg %p156
      %p163 = scmp.eq.s32.totalorder %s16, 1
      %p164 = por %p162, %p163
      %p165 = scmp.ne.s32.totalorder %s157, %s160
      %p166 = scmp.eq.s32.totalorder %s16, 0
      %p167 = por %p165, %p166
      %p168 = scmp.ne.s32.totalorder %s157, %s160
      %p169 = scmp.eq.s32.totalorder %s21, 1
      %p170 = por %p168, %p169
      %p171 = scmp.ne.s32.totalorder %s160, %s161
      %p172 = scmp.eq.s32.totalorder %s21, 0
      %p173 = por %p171, %p172
      %p174 = scmp.ne.s32.totalorder %s160, %s161
      %p175 = scmp.eq.s32.totalorder %s22, 1
      %p176 = por %p174, %p175
      %p178 = scmp.ne.s32.totalorder %s161, %s177
      %p179 = scmp.eq.s32.totalorder %s22, 0
      %p180 = por %p178, %p179
      %p181 = scmp.le.s32.totalorder 1, %s16
      %p182 = scmp.lt.s32.totalorder %s16, 3
      %p183 = pnand %p181, %p182
      %p184 = pneg %p183
      // Predicated region
      $region9: #{tpu_custom_call.1} parent=5 // pred_check
        _
      $region10: #{tpu_custom_call.1} parent=5 // pred_check_branch
        %186 = sbr.rel (%p183) target = $region12
      $region11: #{tpu_custom_call.1} parent=5 // pred_region
        %s187 = ssub.s32 %s16, 1
        // Predicated region
        $region13: #{tpu_custom_call.1} parent=11 // pred_check
          %p188 = pneg %p63
        $region14: #{tpu_custom_call.1} parent=11 // pred_check_branch
          %190 = sbr.rel (%p188) target = $region16
        $region15: #{tpu_custom_call.1} parent=11 // pred_region
          %s192 = ssub.s32 512, 512
          %193 = vsyncadd [#allocation3], %s192
          %s194 = sshll.u32 [#allocation2], 4
          %s195 = int_to_ptr.vmem [resolvable:$true] %s194
          %200 = dma.hbm_to_vmem [thread:$0]  %s1, 512, %s195, [#allocation3], 256, 256, 16
        $region16: #{tpu_custom_call.1} parent=11 // pred_fallthru
          _
        // Predicated region
        $region17: #{tpu_custom_call.1} parent=11 // pred_check
          %p201 = pneg %p84
        $region18: #{tpu_custom_call.1} parent=11 // pred_check_branch
          %203 = sbr.rel (%p201) target = $region20
        $region19: #{tpu_custom_call.1} parent=11 // pred_region
          _
        $region20: #{tpu_custom_call.1} parent=11 // pred_fallthru
          _
        // Predicated region
        $region21: #{tpu_custom_call.1} parent=11 // pred_check
          %p204 = pneg %p105
        $region22: #{tpu_custom_call.1} parent=11 // pred_check_branch
          %206 = sbr.rel (%p204) target = $region24
        $region23: #{tpu_custom_call.1} parent=11 // pred_region
          _
        $region24: #{tpu_custom_call.1} parent=11 // pred_fallthru
          _
        // Predicated region
        $region25: #{tpu_custom_call.1} parent=11 // pred_check
          %p207 = pneg %p126
        $region26: #{tpu_custom_call.1} parent=11 // pred_check_branch
          %209 = sbr.rel (%p207) target = $region28
        $region27: #{tpu_custom_call.1} parent=11 // pred_region
          _
        $region28: #{tpu_custom_call.1} parent=11 // pred_fallthru
          _
        // Predicated region
        $region29: #{tpu_custom_call.1} parent=11 // pred_check
          %p210 = pneg %p147
        $region30: #{tpu_custom_call.1} parent=11 // pred_check_branch
          %212 = sbr.rel (%p210) target = $region32
        $region31: #{tpu_custom_call.1} parent=11 // pred_region
          _
        $region32: #{tpu_custom_call.1} parent=11 // pred_fallthru
          _
      $region12: #{tpu_custom_call.1} parent=5 // pred_fallthru
        _
      %p213 = scmp.lt.s32.totalorder %s16, 2
      // Predicated region
      $region33: #{tpu_custom_call.1} parent=5 // pred_check
        %p214 = pneg %p213
      $region34: #{tpu_custom_call.1} parent=5 // pred_check_branch
        %216 = sbr.rel (%p214) target = $region36
      $region35: #{tpu_custom_call.1} parent=5 // pred_region
        // Predicated region
        $region37: #{tpu_custom_call.1} parent=35 // pred_check
          %p217 = pneg %p36
        $region38: #{tpu_custom_call.1} parent=35 // pred_check_branch
          %219 = sbr.rel (%p217) target = $region40
        $region39: #{tpu_custom_call.1} parent=35 // pred_region
          %p220 = scmp.lt.s32.totalorder %s16, 1
          %s221 = scalar_select %p220, %s16, 1
          %s222 = smul.addr %s221, 2
          %s223 = smul.addr %s222, 4
          %s224 = scalar_lea.vmem %s0, %s223
        $region40: #{tpu_custom_call.1} parent=35 // pred_fallthru
          _
      $region36: #{tpu_custom_call.1} parent=5 // pred_fallthru
        _
      %p225 = scmp.le.s32.totalorder 1, %s16
      %p226 = scmp.lt.s32.totalorder %s16, 3
      %p227 = pnand %p225, %p226
      %p228 = pneg %p227
      // Predicated region
      $region41: #{tpu_custom_call.1} parent=5 // pred_check
        _
      $region42: #{tpu_custom_call.1} parent=5 // pred_check_branch
        %230 = sbr.rel (%p227) target = $region44
      $region43: #{tpu_custom_call.1} parent=5 // pred_region
        %s231 = ssub.s32 %s16, 1
        // Predicated region
        $region45: #{tpu_custom_call.1} parent=43 // pred_check
          %p232 = pneg %p63
        $region46: #{tpu_custom_call.1} parent=43 // pred_check_branch
          %234 = sbr.rel (%p232) target = $region48
        $region47: #{tpu_custom_call.1} parent=43 // pred_region
          %235 = dma.done [#allocation3], 512
        $region48: #{tpu_custom_call.1} parent=43 // pred_fallthru
          _
        %p236 = scmp.lt.s32.totalorder %s21, 1
        %s237 = scalar_select %p236, %s21, 1
        %s238 = smul.addr %s237, 2
        %s239 = smul.addr %s238, 4
        %s240 = scalar_lea.vmem %s0, %s239
        %p241 = pneg %p42
        %p242 = pneg %p39
        %p243 = pneg %p63
        %p244 = pneg %p60
        %p245 = pneg %p84
        %p246 = pneg %p81
        %p247 = pneg %p105
        %p248 = pneg %p102
        %p249 = pneg %p126
        %p250 = pneg %p123
        %p251 = pneg %p147
        %p252 = pneg %p144
        %p253 = pneg %p173
        %p254 = pneg %p170
        %s255 = sand.u32 %s160, 1
        %s256 = scalar_lea.sflag [#allocation4], %s255
        %s257 = sand.u32 %s160, 1
        %s258 = smul.addr %s257, 8
        %s259 = scalar_lea.vmem [#allocation5], %s258
        %p260 = scmp.lt.s32.totalorder %s21, 1
        %s261 = scalar_select %p260, %s21, 1
        %s262 = smul.addr %s261, 2
        %s263 = smul.addr %s262, 4
        %s264 = scalar_lea.vmem %s0, %s263
        %v266 = vld [vmem:[%s264] sm:$0xff]
        %v268 = vcombine.high %v266, %v266
        %270 = vrot.lane.b32.xlu0 %v266, 17
        %v271 = vpop.permute.xlu0 %270
        %272 = vrot.lane.b32.xlu0 %v268, 17
        %v273 = vpop.permute.xlu0 %272
        %v274 = vlaneseq
        %v275 = vand.u32 %v274, 127
        %vm276 = vcmp.lt.s32.totalorder %v275, 17
        %v277 = vsel %vm276, %v271, %v273
        %v278 = vsel %vm276, %v273, %v271
        %v279 = vld [vmem:[#allocation2] ss:$8 sm:$0x3]
        %v281 = vlaneseq
        %v282 = vshrl.u32 %v281, 7
        %v283 = vsub.s32 0, %v282
        %v284 = vrot.slane %v279, %v283
        %v285 = vlaneseq
        %v286 = vshrl.u32 %v285, 7
        %v287 = vsub.s32 1, %v286
        %v288 = vrot.slane %v279, %v287
        %v291 = vmul.f32 %v278, %v284
        %v292 = vmul.f32 %v277, %v288
        %293 = vrot.lane.b32.xlu0 %v266, 16
        %v294 = vpop.permute.xlu0 %293
        %295 = vrot.lane.b32.xlu0 %v268, 16
        %v296 = vpop.permute.xlu0 %295
        %vm297 = vcmp.lt.s32.totalorder %v275, 16
        %v298 = vsel %vm297, %v294, %v296
        %v299 = vsel %vm297, %v296, %v294
        %s300 = scalar_lea.vmem [#allocation2], 1
        %v301 = vld [vmem:[%s300] ss:$8 sm:$0x3]
        %v303 = vlaneseq
        %v304 = vshrl.u32 %v303, 7
        %v305 = vsub.s32 0, %v304
        %v306 = vrot.slane %v301, %v305
        %v307 = vlaneseq
        %v308 = vshrl.u32 %v307, 7
        %v309 = vsub.s32 1, %v308
        %v310 = vrot.slane %v301, %v309
        %v313 = vmul.f32 %v299, %v306
        %v314 = vmul.f32 %v298, %v310
        %315 = vrot.lane.b32.xlu0 %v266, 15
        %v316 = vpop.permute.xlu0 %315
        %317 = vrot.lane.b32.xlu0 %v268, 15
        %v318 = vpop.permute.xlu0 %317
        %vm319 = vcmp.lt.s32.totalorder %v275, 15
        %v320 = vsel %vm319, %v316, %v318
        %v321 = vsel %vm319, %v318, %v316
        %s322 = scalar_lea.vmem [#allocation2], 2
        %v323 = vld [vmem:[%s322] ss:$8 sm:$0x3]
        %v325 = vlaneseq
        %v326 = vshrl.u32 %v325, 7
        %v327 = vsub.s32 0, %v326
        %v328 = vrot.slane %v323, %v327
        %v329 = vlaneseq
        %v330 = vshrl.u32 %v329, 7
        %v331 = vsub.s32 1, %v330
        %v332 = vrot.slane %v323, %v331
        %v335 = vmul.f32 %v321, %v328
        %v336 = vmul.f32 %v320, %v332
        %337 = vrot.lane.b32.xlu0 %v266, 1
        %v338 = vpop.permute.xlu0 %337
        %339 = vrot.lane.b32.xlu0 %v268, 1
        %v340 = vpop.permute.xlu0 %339
        %vm341 = vcmp.lt.s32.totalorder %v275, 1
        %v342 = vsel %vm341, %v338, %v340
        %v343 = vsel %vm341, %v340, %v338
        %s344 = scalar_lea.vmem [#allocation2], 3
        %v345 = vld [vmem:[%s344] ss:$8 sm:$0x3]
        %v347 = vlaneseq
        %v348 = vshrl.u32 %v347, 7
        %v349 = vsub.s32 0, %v348
        %v350 = vrot.slane %v345, %v349
        %v351 = vlaneseq
        %v352 = vshrl.u32 %v351, 7
        %v353 = vsub.s32 1, %v352
        %v354 = vrot.slane %v345, %v353
        %v357 = vmul.f32 %v343, %v350
        %v358 = vmul.f32 %v342, %v354
        %s359 = scalar_lea.vmem [#allocation2], 4
        %v360 = vld [vmem:[%s359] ss:$8 sm:$0x3]
        %v362 = vlaneseq
        %v363 = vshrl.u32 %v362, 7
        %v364 = vsub.s32 0, %v363
        %v365 = vrot.slane %v360, %v364
        %v366 = vlaneseq
        %v367 = vshrl.u32 %v366, 7
        %v368 = vsub.s32 1, %v367
        %v369 = vrot.slane %v360, %v368
        %v370 = vcombine.low %v365, %v369
        %v372 = vmul.f32 %v266, %v370
        %373 = vrot.lane.b32.xlu0 %v266, 127
        %v374 = vpop.permute.xlu0 %373
        %375 = vrot.lane.b32.xlu0 %v268, 127
        %v376 = vpop.permute.xlu0 %375
        %vm377 = vcmp.lt.s32.totalorder %v275, 127
        %v378 = vsel %vm377, %v374, %v376
        %v379 = vsel %vm377, %v376, %v374
        %s380 = scalar_lea.vmem [#allocation2], 5
        %v381 = vld [vmem:[%s380] ss:$8 sm:$0x3]
        %v383 = vlaneseq
        %v384 = vshrl.u32 %v383, 7
        %v385 = vsub.s32 0, %v384
        %v386 = vrot.slane %v381, %v385
        %v387 = vlaneseq
        %v388 = vshrl.u32 %v387, 7
        %v389 = vsub.s32 1, %v388
        %v390 = vrot.slane %v381, %v389
        %v393 = vmul.f32 %v378, %v386
        %v394 = vmul.f32 %v379, %v390
        %395 = vrot.lane.b32.xlu0 %v266, 113
        %v396 = vpop.permute.xlu0 %395
        %397 = vrot.lane.b32.xlu0 %v268, 113
        %v398 = vpop.permute.xlu0 %397
        %vm399 = vcmp.lt.s32.totalorder %v275, 113
        %v400 = vsel %vm399, %v396, %v398
        %v401 = vsel %vm399, %v398, %v396
        %s402 = scalar_lea.vmem [#allocation2], 6
        %v403 = vld [vmem:[%s402] ss:$8 sm:$0x3]
        %v405 = vlaneseq
        %v406 = vshrl.u32 %v405, 7
        %v407 = vsub.s32 0, %v406
        %v408 = vrot.slane %v403, %v407
        %v409 = vlaneseq
        %v410 = vshrl.u32 %v409, 7
        %v411 = vsub.s32 1, %v410
        %v412 = vrot.slane %v403, %v411
        %v415 = vmul.f32 %v400, %v408
        %v416 = vmul.f32 %v401, %v412
        %417 = vrot.lane.b32.xlu0 %v266, 112
        %v418 = vpop.permute.xlu0 %417
        %419 = vrot.lane.b32.xlu0 %v268, 112
        %v420 = vpop.permute.xlu0 %419
        %vm421 = vcmp.lt.s32.totalorder %v275, 112
        %v422 = vsel %vm421, %v418, %v420
        %v423 = vsel %vm421, %v420, %v418
        %s424 = scalar_lea.vmem [#allocation2], 7
        %v425 = vld [vmem:[%s424] ss:$8 sm:$0x3]
        %v427 = vlaneseq
        %v428 = vshrl.u32 %v427, 7
        %v429 = vsub.s32 0, %v428
        %v430 = vrot.slane %v425, %v429
        %v431 = vlaneseq
        %v432 = vshrl.u32 %v431, 7
        %v433 = vsub.s32 1, %v432
        %v434 = vrot.slane %v425, %v433
        %v437 = vmul.f32 %v422, %v430
        %v438 = vmul.f32 %v423, %v434
        %439 = vrot.lane.b32.xlu0 %v266, 111
        %v440 = vpop.permute.xlu0 %439
        %441 = vrot.lane.b32.xlu0 %v268, 111
        %v442 = vpop.permute.xlu0 %441
        %vm443 = vcmp.lt.s32.totalorder %v275, 111
        %v444 = vsel %vm443, %v440, %v442
        %v445 = vsel %vm443, %v442, %v440
        %s446 = scalar_lea.vmem [#allocation2], 16
        %v447 = vld [vmem:[%s446] ss:$8 sm:$0x3]
        %v449 = vlaneseq
        %v450 = vshrl.u32 %v449, 7
        %v451 = vsub.s32 0, %v450
        %v452 = vrot.slane %v447, %v451
        %v453 = vlaneseq
        %v454 = vshrl.u32 %v453, 7
        %v455 = vsub.s32 1, %v454
        %v456 = vrot.slane %v447, %v455
        %v459 = vmul.f32 %v444, %v452
        %v460 = vmul.f32 %v445, %v456
        %v463 = vrot.slane %v313, 4
        %v464 = vrot.slane %v314, 4
        %v469 = vrot.slane %v357, 4
        %v470 = vrot.slane %v358, 4
        %v474 = vcombine.high %v372, %v372
        %v478 = vrot.slane %v393, 4
        %v479 = vrot.slane %v394, 4
        %v484 = vrot.slane %v437, 4
        %v485 = vrot.slane %v438, 4
        %vm488 = vcmask 1043456
        %v489 = vsel %vm488, %v291, %v463
        %v490 = vsel %vm488, %v292, %v464
        %v491 = vsel %vm488, %v335, %v469
        %v492 = vsel %vm488, %v336, %v470
        %v493 = vsel %vm488, %v372, %v478
        %v494 = vsel %vm488, %v474, %v479
        %v495 = vsel %vm488, %v415, %v484
        %v496 = vsel %vm488, %v416, %v485
        %v497 = vpack.c.bf16 %v491, %v489
        %v498 = vpack.c.bf16 %v492, %v490
        %v499 = vpack.c.bf16 %v495, %v493
        %v500 = vpack.c.bf16 %v496, %v494
        %v501 = vpack.c.bf16 %v459, %v459
        %v502 = vpack.c.bf16 %v460, %v460
        %v503 = vld [vmem:[%s2] sm:$0xf]
        %v504 = vld [vmem:[%s2 + $0x4] sm:$0xf]
        %v505 = vld [vmem:[%s3] sm:$0xff]
        %v506 = vld [vmem:[%s3 + $0x8] sm:$0xff]
        %508 = vset.pattern.permute.xlu0 0
        %509 = vperm.xlu0 %508, %v505
        %v510 = vpop.permute.xlu0 %509
        %513 = vset.pattern.permute.xlu0 0
        %514 = vperm.xlu0 %513, %v506
        %v515 = vpop.permute.xlu0 %514
        %v519 = vunpack.c.l.b16 %v503
        %v520 = vunpack.c.l.b16 %v504
        %v521 = vpack.c.b16 %v520, %v519
        %vm522 = vcmask 293888
        %v524 = vsel %vm522, %v521, 0
        %vm526 = vcmask 1041408
        %v528 = vsel %vm526, %v501, 0
        %v531 = vsel %vm526, %v502, 0
        %533 = vmatprep.subr.bf16.mxu0 %v498
        %534 = vmatpush1.bf16.msra.mxu0 %v497
        %535 = vmatprep.subr.bf16.mxu0 %v500
        %536 = vmatpush1.bf16.msra.mxu0 %v499
        %537 = vmatprep.subr.bf16.mxu0 %v531
        %538 = vmatpush1.bf16.msra.mxu0 %v528
        %539 = vmatprep.subr.bf16.mxu0 0
        %540 = vmatpush1.bf16.msra.mxu0 0
        %541 = vmatprep.subr.bf16.mxu0 0
        %542 = vmatpush1.bf16.msra.mxu0 0
        %543 = vmatprep.subr.bf16.mxu0 0
        %544 = vmatpush1.bf16.msra.mxu0 0
        %545 = vmatprep.subr.bf16.mxu0 0
        %546 = vmatpush1.bf16.msra.mxu0 0
        %547 = vmatprep.subr.bf16.mxu0 0
        %548 = vmatpush1.bf16.msra.mxu0 0
        %549 = vmatprep.subr.bf16.mxu0 0
        %550 = vmatpush1.bf16.msra.mxu0 0
        %551 = vmatprep.subr.bf16.mxu0 0
        %552 = vmatpush1.bf16.msra.mxu0 0
        %553 = vmatprep.subr.bf16.mxu0 0
        %554 = vmatpush1.bf16.msra.mxu0 0
        %555 = vmatprep.subr.bf16.mxu0 0
        %556 = vmatpush1.bf16.msra.mxu0 0
        %557 = vmatprep.subr.bf16.mxu0 0
        %558 = vmatpush1.bf16.msra.mxu0 0
        %559 = vmatprep.subr.bf16.mxu0 0
        %560 = vmatpush1.bf16.msra.mxu0 0
        %561 = vmatprep.subr.bf16.mxu0 0
        %562 = vmatpush1.bf16.msra.mxu0 0
        %563 = vmatprep.subr.bf16.mxu0 0
        %564 = vmatpush1.bf16.msra.mxu0 0
        %565 = vmatprep.mubr.bf16.mxu0 0
        %566 = vmatmul.mubr.bf16.gmra.mrb[0].mxu0 %v524
        %v567 = vpop.f32.mrb[0].mxu0
        %v568 = vadd.f32 %v510, %v567
        %v569 = vpop.f32.mrb[0].mxu0
        %v570 = vadd.f32 %v510, %v569
        %v571 = vpop.f32.mrb[0].mxu0
        %v572 = vadd.f32 %v515, %v571
        %v573 = vpop.f32.mrb[0].mxu0
        %v574 = vadd.f32 %v515, %v573
        %575 = vdwg.mxu0
        %v576 = vxor.u32 %v568, 2147483648
        %v577 = vxor.u32 %v570, 2147483648
        %v578 = vxor.u32 %v572, 2147483648
        %v579 = vxor.u32 %v574, 2147483648
        %v580 = vmul.f32 %v576, 1.442695
        %v581 = vpow.pop %v580
        %v582 = vmul.f32 %v577, 1.442695
        %v583 = vpow.pop %v582
        %v584 = vmul.f32 %v578, 1.442695
        %v585 = vpow.pop %v584
        %v586 = vmul.f32 %v579, 1.442695
        %v587 = vpow.pop %v586
        %v588 = vadd.f32 %v581, 1.0
        %v589 = vadd.f32 %v583, 1.0
        %v590 = vadd.f32 %v585, 1.0
        %v591 = vadd.f32 %v587, 1.0
        %v592 = vrcp.pop %v588
        %v593 = vmul.f32 1.0, %v592
        %v594 = vrcp.pop %v589
        %v595 = vmul.f32 1.0, %v594
        %v596 = vrcp.pop %v590
        %v597 = vmul.f32 1.0, %v596
        %v598 = vrcp.pop %v591
        %v599 = vmul.f32 1.0, %v598
        %v600 = vmul.f32 %v568, %v593
        %v601 = vmul.f32 %v570, %v595
        %v602 = vmul.f32 %v572, %v597
        %v603 = vmul.f32 %v574, %v599
        %v604 = vld [vmem:[%s4] sm:$0x3]
        %v605 = vpack.c.bf16 %v602, %v600
        %v606 = vpack.c.bf16 %v603, %v601
        %v607 = vld [vmem:[%s5] sm:$0xf]
        %609 = vset.pattern.permute.xlu0 0
        %610 = vperm.xlu0 %609, %v607
        %v611 = vpop.permute.xlu0 %610
        %vm613 = vcmask 130048
        %v615 = vsel %vm613, %v604, 0
        %617 = vmatprep.subr.bf16.mxu0 %v606
        %618 = vmatpush1.bf16.msra.mxu0 %v605
        %619 = vmatprep.subr.bf16.mxu0 0
        %620 = vmatpush1.bf16.msra.mxu0 0
        %621 = vmatprep.subr.bf16.mxu0 0
        %622 = vmatpush1.bf16.msra.mxu0 0
        %623 = vmatprep.subr.bf16.mxu0 0
        %624 = vmatpush1.bf16.msra.mxu0 0
        %625 = vmatprep.subr.bf16.mxu0 0
        %626 = vmatpush1.bf16.msra.mxu0 0
        %627 = vmatprep.subr.bf16.mxu0 0
        %628 = vmatpush1.bf16.msra.mxu0 0
        %629 = vmatprep.subr.bf16.mxu0 0
        %630 = vmatpush1.bf16.msra.mxu0 0
        %631 = vmatprep.subr.bf16.mxu0 0
        %632 = vmatpush1.bf16.msra.mxu0 0
        %633 = vmatprep.subr.bf16.mxu0 0
        %634 = vmatpush1.bf16.msra.mxu0 0
        %635 = vmatprep.subr.bf16.mxu0 0
        %636 = vmatpush1.bf16.msra.mxu0 0
        %637 = vmatprep.subr.bf16.mxu0 0
        %638 = vmatpush1.bf16.msra.mxu0 0
        %639 = vmatprep.subr.bf16.mxu0 0
        %640 = vmatpush1.bf16.msra.mxu0 0
        %641 = vmatprep.subr.bf16.mxu0 0
        %642 = vmatpush1.bf16.msra.mxu0 0
        %643 = vmatprep.subr.bf16.mxu0 0
        %644 = vmatpush1.bf16.msra.mxu0 0
        %645 = vmatprep.subr.bf16.mxu0 0
        %646 = vmatpush1.bf16.msra.mxu0 0
        %647 = vmatprep.subr.bf16.mxu0 0
        %648 = vmatpush1.bf16.msra.mxu0 0
        %649 = vmatprep.mubr.bf16.mxu0 0
        %650 = vmatmul.mubr.bf16.gmra.mrb[0].mxu0 %v615
        %v651 = vpop.f32.mrb[0].mxu0
        %v652 = vadd.f32 %v611, %v651
        %v653 = vpop.f32.mrb[0].mxu0
        %v654 = vadd.f32 %v611, %v653
        %v655 = vpop.f32.mrb[0].mxu0
        %v656 = vpop.f32.mrb[0].mxu0
        %657 = vdwg.mxu0
        %v658 = vadd.f32 %v652, %v266
        %v659 = vadd.f32 %v654, %v268
        %v662 = vcombine.low %v658, %v659
        %664 = vst [vmem:[%s259] sm:$0xff] %v662
        %s665 = sand.u32 %s160, 1
        %s666 = scalar_lea.sflag [#allocation4], %s665
        %s667 = sand.u32 %s160, 1
        %s668 = smul.addr %s667, 8
        %s669 = scalar_lea.vmem [#allocation5], %s668
        // Predicated region
        $region49: #{tpu_custom_call.1} parent=43 // pred_check
          %p670 = pneg %p170
        $region50: #{tpu_custom_call.1} parent=43 // pred_check_branch
          %672 = sbr.rel (%p670) target = $region52
        $region51: #{tpu_custom_call.1} parent=43 // pred_region
          %s674 = ssub.s32 128, 128
          %675 = vsyncadd %s666, %s674
          %s676 = smul.addr %s21, 2
          %s677 = smul.addr %s676, 64
          %s678 = scalar_lea.hbm %s6, %s677
          %s680 = sshll.u32 %s669, 4
          %s681 = int_to_ptr.vmem [resolvable:$true] %s680
          %683 = dma.vmem_to_hbm [thread:$0]  %s681, 128, %s678, %s666
        $region52: #{tpu_custom_call.1} parent=43 // pred_fallthru
          _
      $region44: #{tpu_custom_call.1} parent=5 // pred_fallthru
        _
      %p684 = scmp.le.s32.totalorder 2, %s16
      // Predicated region
      $region53: #{tpu_custom_call.1} parent=5 // pred_check
        %p685 = pneg %p684
      $region54: #{tpu_custom_call.1} parent=5 // pred_check_branch
        %687 = sbr.rel (%p685) target = $region56
      $region55: #{tpu_custom_call.1} parent=5 // pred_region
        %s688 = ssub.s32 %s16, 2
        // Predicated region
        $region57: #{tpu_custom_call.1} parent=55 // pred_check
          %p689 = pneg %p176
        $region58: #{tpu_custom_call.1} parent=55 // pred_check_branch
          %691 = sbr.rel (%p689) target = $region60
        $region59: #{tpu_custom_call.1} parent=55 // pred_region
          %s692 = sand.u32 %s161, 1
          %s693 = scalar_lea.sflag [#allocation4], %s692
          %s694 = sand.u32 %s161, 1
          %s695 = smul.addr %s694, 8
          %s696 = scalar_lea.vmem [#allocation5], %s695
          %697 = dma.done %s693, 128
        $region60: #{tpu_custom_call.1} parent=55 // pred_fallthru
          _
      $region56: #{tpu_custom_call.1} parent=5 // pred_fallthru
        _
    $region6: #{tpu_custom_call.1} parent=1 // loop_footer
      %s20 = sadd.s32 1, %s16
    $region7: #{tpu_custom_call.1} parent=1 // loop_footer_branch
      %15 = sbr.rel target = $region3
    $region8: #{tpu_custom_call.1} parent=1 // loop_exit
      _
    %698 = vsyncpa [#allocation3], 1
    %s699 = scalar_lea.sflag [#allocation3], 1
    %700 = vsyncpa %s699, 1
    %701 = vsyncpa [#allocation4], 1
    %s702 = scalar_lea.sflag [#allocation4], 1
    %703 = vsyncpa %s702, 1

</llo_original>
